<compile_context>
chip_gen: v7x
topology: tpu7x:2x2x1
jax: 0.10.0
libtpu: 0.0.40
codegen_flags: <defaults>
</compile_context>

<pallas_src>
import functools

import jax
import jax.numpy as jnp
from jax.experimental import pallas as pl
from jax.experimental.pallas import tpu as pltpu


def _sublane(dtype):
    return {4: 8, 2: 16, 1: 32}[jnp.dtype(dtype).itemsize]


def _tsm_kernel(xn_ref, xp_ref, xc_ref, o_ref, *, fold, fold_blocks):
    """Writes one (b_tile, c, hw_tile) output block at (batch-block, segment t)."""
    t = pl.program_id(1)
    n_seg = pl.num_programs(1)
    b_tile, c, hw = o_ref.shape

    # Channels [2*fold:] pass straight through from the current frame.
    if 2 * fold < c:
        o_ref[:, 2 * fold:, :] = xc_ref[:, 2 * fold:, :]

    # shift-left channels [0:fold]: data from t+1, zero at the last segment.
    @pl.when(t < n_seg - 1)
    def _():
        o_ref[:, :fold, :] = xn_ref[...] if fold_blocks else xn_ref[:, :fold, :]

    @pl.when(t == n_seg - 1)
    def _():
        o_ref[:, :fold, :] = jnp.zeros((b_tile, fold, hw), o_ref.dtype)

    # shift-right channels [fold:2*fold]: data from t-1, zero at the first segment.
    @pl.when(t > 0)
    def _():
        o_ref[:, fold:2 * fold, :] = (
            xp_ref[...] if fold_blocks else xp_ref[:, fold:2 * fold, :])

    @pl.when(t == 0)
    def _():
        o_ref[:, fold:2 * fold, :] = jnp.zeros((b_tile, fold, hw), o_ref.dtype)


def _choose_tiles(n_batch, c, hw_pad, fold, itemsize, fold_blocks,
                  vmem_budget_bytes=12 * 1024 * 1024):
    """Pick (b_tile, hw_tile) so the double-buffered live set fits comfortably in
    the default scoped VMEM on every generation (v5e: 16 MiB default)."""
    shifted_c = 2 * fold if fold_blocks else 2 * c      # next + prev channels
    chans = 2 * c + shifted_c                            # + curr + out

    def live_bytes(b_tile, hw_tile):
        return 2 * chans * hw_tile * itemsize * b_tile   # x2: double buffering

    hw_tile = hw_pad
    while live_bytes(1, hw_tile) > vmem_budget_bytes and hw_tile % 256 == 0:
        hw_tile //= 2

    b_tile = 1
    for cand in range(n_batch, 0, -1):
        if n_batch % cand == 0 and live_bytes(cand, hw_tile) <= vmem_budget_bytes:
            b_tile = cand
            break
    return b_tile, hw_tile


def tsm_shift(x, n_segment=3, fold_div=8):
    """Pallas TSM forward. x: (nt, c, h, w)."""
    nt, c, h, w = x.shape
    assert nt % n_segment == 0
    n_batch = nt // n_segment
    fold = c // fold_div
    if fold == 0:
        return x  # nothing shifts; out == x

    hw = h * w
    hw_pad = pl.cdiv(hw, 128) * 128                      # lane-dense stores
    x5 = x.reshape(n_batch, n_segment, c, hw)
    if hw_pad != hw:
        x5 = jnp.pad(x5, ((0, 0), (0, 0), (0, 0), (0, hw_pad - hw)))

    itemsize = jnp.dtype(x.dtype).itemsize
    # fold-sized next/prev channel blocks require sublane alignment.
    fold_blocks = (fold % _sublane(x.dtype) == 0)

    b_tile, hw_tile = _choose_tiles(n_batch, c, hw_pad, fold, itemsize, fold_blocks)
    grid = (n_batch // b_tile, n_segment, hw_pad // hw_tile)

    blk_full = (b_tile, None, c, hw_tile)                # segment dim squeezed
    shift_c = fold if fold_blocks else c
    blk_shift = (b_tile, None, shift_c, hw_tile)

    def curr_map(b, t, s):
        return (b, t, 0, s)

    def next_map(b, t, s):                               # channels [0:fold] of t+1
        return (b, jnp.minimum(t + 1, n_segment - 1), 0, s)

    def prev_map(b, t, s):                               # channels [fold:2fold] of t-1
        return (b, jnp.maximum(t - 1, 0), 1 if fold_blocks else 0, s)

    out = pl.pallas_call(
        functools.partial(_tsm_kernel, fold=fold, fold_blocks=fold_blocks),
        out_shape=jax.ShapeDtypeStruct((n_batch, n_segment, c, hw_pad), x.dtype),
        grid_spec=pltpu.PrefetchScalarGridSpec(
            num_scalar_prefetch=0,
            grid=grid,
            in_specs=[pl.BlockSpec(blk_shift, next_map),
                      pl.BlockSpec(blk_shift, prev_map),
                      pl.BlockSpec(blk_full, curr_map)],
            out_specs=pl.BlockSpec(blk_full, curr_map),
        ),
        compiler_params=pltpu.CompilerParams(
            dimension_semantics=("parallel", "parallel", "parallel")),
    )(x5, x5, x5)

    if hw_pad != hw:
        out = out[..., :hw]
    return out.reshape(nt, c, h, w)


def tsm_shift_ref(x, n_segment=3, fold_div=8):
    """Pure-JAX reference mirroring the PyTorch TSM.shift."""
    nt, c, h, w = x.shape
    n_batch = nt // n_segment
    fold = c // fold_div
    x5 = x.reshape(n_batch, n_segment, c, h, w)
    out = jnp.zeros_like(x5)
    out = out.at[:, :-1, :fold].set(x5[:, 1:, :fold])
    out = out.at[:, 1:, fold:2 * fold].set(x5[:, :-1, fold:2 * fold])
    out = out.at[:, :, 2 * fold:].set(x5[:, :, 2 * fold:])
    return out.reshape(nt, c, h, w)


if __name__ == "__main__":
    # Config 1: sublane-aligned fold (c=64, fold=8) and hw multiple of 128
    # -> exercises the optimized fold-block path with lane-dense stores.
    n_segment, n_batch, c, h, w = 3, 2, 64, 16, 16
    x1 = jax.random.normal(jax.random.PRNGKey(0),
                           (n_batch * n_segment, c, h, w), dtype=jnp.float32)
    y1 = jax.block_until_ready(tsm_shift(x1, n_segment=n_segment, fold_div=8))
    assert y1.shape == x1.shape
    assert jnp.allclose(y1, tsm_shift_ref(x1, n_segment, 8), atol=1e-6), \
        "Pallas TSM (fold-block path) mismatch vs reference"

    # Config 2: unaligned fold (c=16, fold=2) and hw=49 -> fallback full-block
    # path with hw padded to 128.
    n_segment2, n_batch2, c2, h2, w2 = 3, 2, 16, 7, 7
    x2 = jax.random.normal(jax.random.PRNGKey(1),
                           (n_batch2 * n_segment2, c2, h2, w2), dtype=jnp.float32)
    y2 = jax.block_until_ready(tsm_shift(x2, n_segment=n_segment2, fold_div=8))
    assert y2.shape == x2.shape
    assert jnp.allclose(y2, tsm_shift_ref(x2, n_segment2, 8), atol=1e-6), \
        "Pallas TSM (fallback path) mismatch vs reference"

    print("KERNEL_OK")
</pallas_src>

<mosaic_0001>
module attributes {stable_mosaic.version = 11 : i64} {
  func.func @_tsm_kernel(%arg0: i32, %arg1: i32, %arg2: i32, %arg3: memref<2x1x8x256xf32, #tpu.memory_space<vmem>>, %arg4: memref<2x1x8x256xf32, #tpu.memory_space<vmem>>, %arg5: memref<2x1x64x256xf32, #tpu.memory_space<vmem>>, %arg6: memref<2x1x64x256xf32, #tpu.memory_space<vmem>>) attributes {dimension_semantics = [#tpu.dimension_semantics<parallel>, #tpu.dimension_semantics<parallel>, #tpu.dimension_semantics<parallel>], iteration_bounds = array<i64: 1, 3, 1>, scalar_prefetch = 0 : i64, scratch_operands = 0 : i64, tpu.core_type = #tpu.core_type<tc>, window_params = [{transform_indices = @transform_0, window_bounds = array<i64: 2, 1, 8, 256>}, {transform_indices = @transform_1, window_bounds = array<i64: 2, 1, 8, 256>}, {transform_indices = @transform_2, window_bounds = array<i64: 2, 1, 64, 256>}, {transform_indices = @transform_3, window_bounds = array<i64: 2, 1, 64, 256>}]} {
    %c0 = arith.constant 0 : index
    %c0_0 = arith.constant 0 : index
    %c16 = arith.constant 16 : index
    %c0_1 = arith.constant 0 : index
    %0 = vector.load %arg5[%c0, %c0_0, %c16, %c0_1] : memref<2x1x64x256xf32, #tpu.memory_space<vmem>>, vector<2x1x48x256xf32>
    %1 = vector.shape_cast %0 : vector<2x1x48x256xf32> to vector<2x48x256xf32>
    %c0_2 = arith.constant 0 : index
    %c0_3 = arith.constant 0 : index
    %c16_4 = arith.constant 16 : index
    %c0_5 = arith.constant 0 : index
    %2 = vector.load %arg6[%c0_2, %c0_3, %c16_4, %c0_5] : memref<2x1x64x256xf32, #tpu.memory_space<vmem>>, vector<2x1x48x256xf32>
    %3 = vector.shape_cast %2 : vector<2x1x48x256xf32> to vector<2x48x256xf32>
    %4 = vector.shape_cast %1 : vector<2x48x256xf32> to vector<2x1x48x256xf32>
    tpu.vector_store %arg6[%c0_2, %c0_3, %c16_4, %c0_5], %4 {strides = array<i32>} : memref<2x1x64x256xf32, #tpu.memory_space<vmem>>, vector<2x1x48x256xf32>,
    %c2_i32 = arith.constant 2 : i32
    %5 = arith.cmpi slt, %arg1, %c2_i32 : i32
    %6 = arith.extui %5 : i1 to i32
    %c0_i32 = arith.constant 0 : i32
    %7 = arith.cmpi ne, %6, %c0_i32 : i32
    scf.if %7 {
      %c0_12 = arith.constant 0 : index
      %c0_13 = arith.constant 0 : index
      %c0_14 = arith.constant 0 : index
      %c0_15 = arith.constant 0 : index
      %17 = vector.load %arg3[%c0_12, %c0_13, %c0_14, %c0_15] : memref<2x1x8x256xf32, #tpu.memory_space<vmem>>, vector<2x1x8x256xf32>
      %18 = vector.shape_cast %17 : vector<2x1x8x256xf32> to vector<2x8x256xf32>
      %c0_16 = arith.constant 0 : index
      %c0_17 = arith.constant 0 : index
      %c0_18 = arith.constant 0 : index
      %c0_19 = arith.constant 0 : index
      %19 = vector.load %arg6[%c0_16, %c0_17, %c0_18, %c0_19] : memref<2x1x64x256xf32, #tpu.memory_space<vmem>>, vector<2x1x8x256xf32>
      %20 = vector.shape_cast %19 : vector<2x1x8x256xf32> to vector<2x8x256xf32>
      %21 = vector.shape_cast %18 : vector<2x8x256xf32> to vector<2x1x8x256xf32>
      tpu.vector_store %arg6[%c0_16, %c0_17, %c0_18, %c0_19], %21 {strides = array<i32>} : memref<2x1x64x256xf32, #tpu.memory_space<vmem>>, vector<2x1x8x256xf32>,
    } else {
    }
    %c2_i32_6 = arith.constant 2 : i32
    %8 = arith.cmpi eq, %arg1, %c2_i32_6 : i32
    %9 = arith.extui %8 : i1 to i32
    %c0_i32_7 = arith.constant 0 : i32
    %10 = arith.cmpi ne, %9, %c0_i32_7 : i32
    scf.if %10 {
      %cst = arith.constant 0.000000e+00 : f32
      %17 = vector.broadcast %cst : f32 to vector<2x8x256xf32>
      %c0_12 = arith.constant 0 : index
      %c0_13 = arith.constant 0 : index
      %c0_14 = arith.constant 0 : index
      %c0_15 = arith.constant 0 : index
      %18 = vector.load %arg6[%c0_12, %c0_13, %c0_14, %c0_15] : memref<2x1x64x256xf32, #tpu.memory_space<vmem>>, vector<2x1x8x256xf32>
      %19 = vector.shape_cast %18 : vector<2x1x8x256xf32> to vector<2x8x256xf32>
      %20 = vector.shape_cast %17 : vector<2x8x256xf32> to vector<2x1x8x256xf32>
      tpu.vector_store %arg6[%c0_12, %c0_13, %c0_14, %c0_15], %20 {strides = array<i32>} : memref<2x1x64x256xf32, #tpu.memory_space<vmem>>, vector<2x1x8x256xf32>,
    } else {
    }
    %c0_i32_8 = arith.constant 0 : i32
    %11 = arith.cmpi sgt, %arg1, %c0_i32_8 : i32
    %12 = arith.extui %11 : i1 to i32
    %c0_i32_9 = arith.constant 0 : i32
    %13 = arith.cmpi ne, %12, %c0_i32_9 : i32
    scf.if %13 {
      %c0_12 = arith.constant 0 : index
      %c0_13 = arith.constant 0 : index
      %c0_14 = arith.constant 0 : index
      %c0_15 = arith.constant 0 : index
      %17 = vector.load %arg4[%c0_12, %c0_13, %c0_14, %c0_15] : memref<2x1x8x256xf32, #tpu.memory_space<vmem>>, vector<2x1x8x256xf32>
      %18 = vector.shape_cast %17 : vector<2x1x8x256xf32> to vector<2x8x256xf32>
      %c0_16 = arith.constant 0 : index
      %c0_17 = arith.constant 0 : index
      %c8 = arith.constant 8 : index
      %c0_18 = arith.constant 0 : index
      %19 = vector.load %arg6[%c0_16, %c0_17, %c8, %c0_18] : memref<2x1x64x256xf32, #tpu.memory_space<vmem>>, vector<2x1x8x256xf32>
      %20 = vector.shape_cast %19 : vector<2x1x8x256xf32> to vector<2x8x256xf32>
      %21 = vector.shape_cast %18 : vector<2x8x256xf32> to vector<2x1x8x256xf32>
      tpu.vector_store %arg6[%c0_16, %c0_17, %c8, %c0_18], %21 {strides = array<i32>} : memref<2x1x64x256xf32, #tpu.memory_space<vmem>>, vector<2x1x8x256xf32>,
    } else {
    }
    %c0_i32_10 = arith.constant 0 : i32
    %14 = arith.cmpi eq, %arg1, %c0_i32_10 : i32
    %15 = arith.extui %14 : i1 to i32
    %c0_i32_11 = arith.constant 0 : i32
    %16 = arith.cmpi ne, %15, %c0_i32_11 : i32
    scf.if %16 {
      %cst = arith.constant 0.000000e+00 : f32
      %17 = vector.broadcast %cst : f32 to vector<2x8x256xf32>
      %c0_12 = arith.constant 0 : index
      %c0_13 = arith.constant 0 : index
      %c8 = arith.constant 8 : index
      %c0_14 = arith.constant 0 : index
      %18 = vector.load %arg6[%c0_12, %c0_13, %c8, %c0_14] : memref<2x1x64x256xf32, #tpu.memory_space<vmem>>, vector<2x1x8x256xf32>
      %19 = vector.shape_cast %18 : vector<2x1x8x256xf32> to vector<2x8x256xf32>
      %20 = vector.shape_cast %17 : vector<2x8x256xf32> to vector<2x1x8x256xf32>
      tpu.vector_store %arg6[%c0_12, %c0_13, %c8, %c0_14], %20 {strides = array<i32>} : memref<2x1x64x256xf32, #tpu.memory_space<vmem>>, vector<2x1x8x256xf32>,
    } else {
    }
    return
  }
  func.func @transform_0(%arg0: i32, %arg1: i32, %arg2: i32) -> (i32, i32, i32, i32) {
    %c1_i32 = arith.constant 1 : i32
    %0 = arith.addi %arg1, %c1_i32 : i32
    %c2_i32 = arith.constant 2 : i32
    %1 = arith.minsi %0, %c2_i32 : i32
    %c0_i32 = arith.constant 0 : i32
    %c0_i32_0 = arith.constant 0 : i32
    return %arg0, %1, %c0_i32, %arg2 : i32, i32, i32, i32
  }
  func.func @transform_1(%arg0: i32, %arg1: i32, %arg2: i32) -> (i32, i32, i32, i32) {
    %c1_i32 = arith.constant 1 : i32
    %0 = arith.subi %arg1, %c1_i32 : i32
    %c0_i32 = arith.constant 0 : i32
    %1 = arith.maxsi %0, %c0_i32 : i32
    %c1_i32_0 = arith.constant 1 : i32
    %c0_i32_1 = arith.constant 0 : i32
    return %arg0, %1, %c1_i32_0, %arg2 : i32, i32, i32, i32
  }
  func.func @transform_2(%arg0: i32, %arg1: i32, %arg2: i32) -> (i32, i32, i32, i32) {
    %c0_i32 = arith.constant 0 : i32
    %c0_i32_0 = arith.constant 0 : i32
    return %arg0, %arg1, %c0_i32, %arg2 : i32, i32, i32, i32
  }
  func.func @transform_3(%arg0: i32, %arg1: i32, %arg2: i32) -> (i32, i32, i32, i32) {
    %c0_i32 = arith.constant 0 : i32
    %c0_i32_0 = arith.constant 0 : i32
    return %arg0, %arg1, %c0_i32, %arg2 : i32, i32, i32, i32
  }
}

</mosaic_0001>

<llo_original>
// kernel: tpu_custom_call.1
$region0: #{tpu_custom_call.1}
  #allocation0 [shape = 'u32[]', space=smem, size = 0x4, offset = 0x4, fixed_abs, tag = 'smem constant byte address 0x4 - core index']
  #allocation1 [shape = 'u32[144,128]{1,0:T(1,128)}', space=vmem, size = 0x12000, scoped, tag = 'internal scratch']
  #allocation9 [shape = 's32[]', space=sflag, size = 0x4, offset = 0, fixed_abs, tag = 'sflag constant byte address 0x0 - dummy sync flag']
  #allocation11 [shape = 's32[]', space=sflag, size = 0x4, offset = 0, fixed_abs, tag = 'sflag constant byte address 0x0 - dummy sync flag']
  %s0 = inlined_call_operand.hbm [shape: f32[2,3,64,256], index: 0, kind: input, shape index: {}]
  %s1 = inlined_call_operand.hbm [shape: f32[2,3,64,256], index: 1, kind: input, shape index: {}]
  %s2 = inlined_call_operand.hbm [shape: f32[2,3,64,256], index: 2, kind: input, shape index: {}]
  %s3 = inlined_call_operand.hbm [shape: f32[2,3,64,256], index: 3, kind: output, shape index: {}]
  %s4 = sld [smem:[#allocation0]]
  $region73: #{tpu_custom_call.1} parent=0
    _
  %s6 = ssub.s32 1, %s4
  %s7 = scalar_select 0, %s6, %s4
  $region1: #{tpu_custom_call.1} parent=0
    #allocation2 [shape = 'u8[32768]{0}', space=vmem, size = 0x8000, scoped, tag = 'input window, operand 0']
    #allocation3 [shape = 's32[2]{0}', space=sflag, size = 0x8, scoped, tag = 'scoped memory for tpu_custom_call.1']
    #allocation4 [shape = 's32[2]{0}', space=sflag, size = 0x8, scoped, tag = 'scoped memory for tpu_custom_call.1']
    #allocation5 [shape = 'u8[32768]{0}', space=vmem, size = 0x8000, scoped, tag = 'input window, operand 1']
    #allocation6 [shape = 's32[2]{0}', space=sflag, size = 0x8, scoped, tag = 'scoped memory for tpu_custom_call.1']
    #allocation7 [shape = 'u8[262144]{0}', space=vmem, size = 0x40000, scoped, tag = 'input window, operand 2']
    #allocation8 [shape = 'u8[262144]{0}', space=vmem, size = 0x40000, scoped, tag = 'output window, operand 0']
    %8 = vsyncpa [#allocation3], 0
    %s9 = scalar_lea.sflag [#allocation3], 1
    %10 = vsyncpa %s9, 0
    %11 = vsyncpa [#allocation6], 0
    %s12 = scalar_lea.sflag [#allocation6], 1
    %13 = vsyncpa %s12, 0
    %14 = vsyncpa [#allocation4], 0
    %s15 = scalar_lea.sflag [#allocation4], 1
    %16 = vsyncpa %s15, 0
    loop: start=0, step=1, limit=5
    $region2: #{tpu_custom_call.1} parent=1 // loop_pre_header
      _
    $region3: #{tpu_custom_call.1} parent=1 // loop_header
      %s18 = sphi 0, %s22
      %p19 = scmp.ge.s32.totalorder %s18, 5
      %s25 = sphi 0, %s44
      %s26 = sphi 0, %s40
      %s27 = sphi 0, %s36
      %s28 = sphi 0, %s25
      %s29 = sphi 0, %s26
      %s30 = sphi 0, %s27
      %s31 = sphi 0, %s28
      %s32 = sphi 0, %s29
      %s33 = sphi 0, %s30
      %s57 = sphi 0, %s59
      %s60 = sphi 0, %s57
      %s61 = sphi 0, %s60
      %s77 = sphi 0, %s61
      %s93 = sphi 0, %s95
      %s96 = sphi 0, %s93
      %s97 = sphi 0, %s96
      %s113 = sphi 0, %s97
      %s123 = sphi 0, %s125
      %s126 = sphi 0, %s123
      %s127 = sphi 0, %s126
      %s143 = sphi 0, %s127
      %s153 = sphi 0, %s155
      %s156 = sphi 0, %s153
      %s157 = sphi 0, %s156
      %s173 = sphi 0, %s157
    $region4: #{tpu_custom_call.1} parent=1 // loop_header_branch
      %21 = sbr.rel (%p19) target = $region8
    $region5: #{tpu_custom_call.1} parent=1 // loop_body
      %s23 = ssub.s32 %s18, 1
      %s24 = ssub.s32 %s18, 2
      %s34 = sadd.s32 1, %s27
      %p35 = scmp.ge.s32.totalorder %s34, 1
      %s36 = scalar_select %p35, 0, %s34
      %s37 = sadd.s32 1, %s26
      %s38 = scalar_select %p35, %s37, %s26
      %p39 = scmp.ge.s32.totalorder %s38, 3
      %s40 = scalar_select %p39, 0, %s38
      %s41 = sadd.s32 1, %s25
      %s42 = scalar_select %p39, %s41, %s25
      %p43 = scmp.ge.s32.totalorder %s42, 1
      %s44 = scalar_select %p43, 0, %s42
      %s45 = sadd.s32 %s26, 1
      %p46 = scmp.lt.s32.totalorder %s45, 2
      %s47 = scalar_select %p46, %s45, 2
      %s48 = sadd.s32 %s40, 1
      %p49 = scmp.lt.s32.totalorder %s48, 2
      %s50 = scalar_select %p49, %s48, 2
      %s51 = ssub.s32 %s25, %s44
      %s52 = ssub.s32 %s47, %s50
      %s53 = sor.u32 %s51, %s52
      %s54 = ssub.s32 %s27, %s36
      %s55 = sor.u32 %s53, %s54
      %p56 = scmp.eq.s32.totalorder %s55, 0
      %s58 = sadd.s32 %s57, 1
      %s59 = scalar_select %p56, %s57, %s58
      %p62 = pneg %p56
      %p63 = scmp.eq.s32.totalorder %s18, 2
      %p64 = por %p62, %p63
      %p65 = scmp.ne.s32.totalorder %s57, %s60
      %p66 = scmp.eq.s32.totalorder %s18, 0
      %p67 = por %p65, %p66
      %p68 = scmp.ne.s32.totalorder %s57, %s60
      %p69 = scmp.eq.s32.totalorder %s23, 2
      %p70 = por %p68, %p69
      %p71 = scmp.ne.s32.totalorder %s60, %s61
      %p72 = scmp.eq.s32.totalorder %s23, 0
      %p73 = por %p71, %p72
      %p74 = scmp.ne.s32.totalorder %s60, %s61
      %p75 = scmp.eq.s32.totalorder %s24, 2
      %p76 = por %p74, %p75
      %p78 = scmp.ne.s32.totalorder %s61, %s77
      %p79 = scmp.eq.s32.totalorder %s24, 0
      %p80 = por %p78, %p79
      %s81 = ssub.s32 %s26, 1
      %p82 = scmp.gt.s32.totalorder %s81, 0
      %s83 = scalar_select %p82, %s81, 0
      %s84 = ssub.s32 %s40, 1
      %p85 = scmp.gt.s32.totalorder %s84, 0
      %s86 = scalar_select %p85, %s84, 0
      %s87 = ssub.s32 %s25, %s44
      %s88 = ssub.s32 %s83, %s86
      %s89 = sor.u32 %s87, %s88
      %s90 = ssub.s32 %s27, %s36
      %s91 = sor.u32 %s89, %s90
      %p92 = scmp.eq.s32.totalorder %s91, 0
      %s94 = sadd.s32 %s93, 1
      %s95 = scalar_select %p92, %s93, %s94
      %p98 = pneg %p92
      %p99 = scmp.eq.s32.totalorder %s18, 2
      %p100 = por %p98, %p99
      %p101 = scmp.ne.s32.totalorder %s93, %s96
      %p102 = scmp.eq.s32.totalorder %s18, 0
      %p103 = por %p101, %p102
      %p104 = scmp.ne.s32.totalorder %s93, %s96
      %p105 = scmp.eq.s32.totalorder %s23, 2
      %p106 = por %p104, %p105
      %p107 = scmp.ne.s32.totalorder %s96, %s97
      %p108 = scmp.eq.s32.totalorder %s23, 0
      %p109 = por %p107, %p108
      %p110 = scmp.ne.s32.totalorder %s96, %s97
      %p111 = scmp.eq.s32.totalorder %s24, 2
      %p112 = por %p110, %p111
      %p114 = scmp.ne.s32.totalorder %s97, %s113
      %p115 = scmp.eq.s32.totalorder %s24, 0
      %p116 = por %p114, %p115
      %s117 = ssub.s32 %s25, %s44
      %s118 = ssub.s32 %s26, %s40
      %s119 = sor.u32 %s117, %s118
      %s120 = ssub.s32 %s27, %s36
      %s121 = sor.u32 %s119, %s120
      %p122 = scmp.eq.s32.totalorder %s121, 0
      %s124 = sadd.s32 %s123, 1
      %s125 = scalar_select %p122, %s123, %s124
      %p128 = pneg %p122
      %p129 = scmp.eq.s32.totalorder %s18, 2
      %p130 = por %p128, %p129
      %p131 = scmp.ne.s32.totalorder %s123, %s126
      %p132 = scmp.eq.s32.totalorder %s18, 0
      %p133 = por %p131, %p132
      %p134 = scmp.ne.s32.totalorder %s123, %s126
      %p135 = scmp.eq.s32.totalorder %s23, 2
      %p136 = por %p134, %p135
      %p137 = scmp.ne.s32.totalorder %s126, %s127
      %p138 = scmp.eq.s32.totalorder %s23, 0
      %p139 = por %p137, %p138
      %p140 = scmp.ne.s32.totalorder %s126, %s127
      %p141 = scmp.eq.s32.totalorder %s24, 2
      %p142 = por %p140, %p141
      %p144 = scmp.ne.s32.totalorder %s127, %s143
      %p145 = scmp.eq.s32.totalorder %s24, 0
      %p146 = por %p144, %p145
      %s147 = ssub.s32 %s25, %s44
      %s148 = ssub.s32 %s26, %s40
      %s149 = sor.u32 %s147, %s148
      %s150 = ssub.s32 %s27, %s36
      %s151 = sor.u32 %s149, %s150
      %p152 = scmp.eq.s32.totalorder %s151, 0
      %s154 = sadd.s32 %s153, 1
      %s155 = scalar_select %p152, %s153, %s154
      %p158 = pneg %p152
      %p159 = scmp.eq.s32.totalorder %s18, 2
      %p160 = por %p158, %p159
      %p161 = scmp.ne.s32.totalorder %s153, %s156
      %p162 = scmp.eq.s32.totalorder %s18, 0
      %p163 = por %p161, %p162
      %p164 = scmp.ne.s32.totalorder %s153, %s156
      %p165 = scmp.eq.s32.totalorder %s23, 2
      %p166 = por %p164, %p165
      %p167 = scmp.ne.s32.totalorder %s156, %s157
      %p168 = scmp.eq.s32.totalorder %s23, 0
      %p169 = por %p167, %p168
      %p170 = scmp.ne.s32.totalorder %s156, %s157
      %p171 = scmp.eq.s32.totalorder %s24, 2
      %p172 = por %p170, %p171
      %p174 = scmp.ne.s32.totalorder %s157, %s173
      %p175 = scmp.eq.s32.totalorder %s24, 0
      %p176 = por %p174, %p175
      %p177 = scmp.le.s32.totalorder 1, %s18
      %p178 = scmp.lt.s32.totalorder %s18, 4
      %p179 = pnand %p177, %p178
      %p180 = pneg %p179
      // Predicated region
      $region9: #{tpu_custom_call.1} parent=5 // pred_check
        _
      $region10: #{tpu_custom_call.1} parent=5 // pred_check_branch
        %182 = sbr.rel (%p179) target = $region12
      $region11: #{tpu_custom_call.1} parent=5 // pred_region
        %s183 = ssub.s32 %s18, 1
      $region12: #{tpu_custom_call.1} parent=5 // pred_fallthru
        _
      %p184 = scmp.lt.s32.totalorder %s18, 3
      // Predicated region
      $region13: #{tpu_custom_call.1} parent=5 // pred_check
        %p185 = pneg %p184
      $region14: #{tpu_custom_call.1} parent=5 // pred_check_branch
        %187 = sbr.rel (%p185) target = $region16
      $region15: #{tpu_custom_call.1} parent=5 // pred_region
        // Predicated region
        $region17: #{tpu_custom_call.1} parent=15 // pred_check
          %p188 = pneg %p67
        $region18: #{tpu_custom_call.1} parent=15 // pred_check_branch
          %190 = sbr.rel (%p188) target = $region20
        $region19: #{tpu_custom_call.1} parent=15 // pred_region
          %s191 = sand.u32 %s57, 1
          %s192 = scalar_lea.sflag [#allocation3], %s191
          %s193 = sand.u32 %s57, 1
          %s194 = smul.addr %s193, 32
          %s195 = scalar_lea.vmem [#allocation2], %s194
          %s196 = sadd.s32 %s26, 1
          %p197 = scmp.lt.s32.totalorder %s196, 2
          %s198 = scalar_select %p197, %s196, 2
          %s199 = smul.u32 2, %s25
          %s200 = smul.u32 2, %s27
          %s202 = ssub.s32 512, 512
          %203 = vsyncadd %s192, %s202
          %s204 = smul.addr %s198, 16
          %s205 = sadd.s32 %s200, %s204
          %s206 = smul.addr %s199, 48
          %s207 = sadd.s32 %s205, %s206
          %s208 = smul.addr %s207, 128
          %s209 = scalar_lea.hbm %s0, %s208
          %s210 = sshll.u32 %s195, 4
          %s211 = int_to_ptr.vmem [resolvable:$true] %s210
          %216 = dma.hbm_to_vmem [thread:$0]  %s209, 512, %s211, %s192, 6144, 256, 16
        $region20: #{tpu_custom_call.1} parent=15 // pred_fallthru
          _
        // Predicated region
        $region21: #{tpu_custom_call.1} parent=15 // pred_check
          %p217 = pneg %p103
        $region22: #{tpu_custom_call.1} parent=15 // pred_check_branch
          %219 = sbr.rel (%p217) target = $region24
        $region23: #{tpu_custom_call.1} parent=15 // pred_region
          %s220 = sand.u32 %s18, 1
          %s221 = scalar_lea.sflag [#allocation6], %s220
          %s222 = sand.u32 %s93, 1
          %s223 = smul.addr %s222, 32
          %s224 = scalar_lea.vmem [#allocation5], %s223
          %s225 = ssub.s32 %s26, 1
          %p226 = scmp.gt.s32.totalorder %s225, 0
          %s227 = scalar_select %p226, %s225, 0
          %s228 = smul.u32 2, %s25
          %s229 = smul.u32 2, %s27
          %s231 = ssub.s32 512, 512
          %232 = vsyncadd %s221, %s231
          %s233 = sadd.s32 %s229, 2
          %s234 = smul.addr %s227, 16
          %s235 = sadd.s32 %s233, %s234
          %s236 = smul.addr %s228, 48
          %s237 = sadd.s32 %s235, %s236
          %s238 = smul.addr %s237, 128
          %s239 = scalar_lea.hbm %s1, %s238
          %s240 = sshll.u32 %s224, 4
          %s241 = int_to_ptr.vmem [resolvable:$true] %s240
          %246 = dma.hbm_to_vmem [thread:$0]  %s239, 512, %s241, %s221, 6144, 256, 16
        $region24: #{tpu_custom_call.1} parent=15 // pred_fallthru
          _
        // Predicated region
        $region25: #{tpu_custom_call.1} parent=15 // pred_check
          %p247 = pneg %p133
        $region26: #{tpu_custom_call.1} parent=15 // pred_check_branch
          %249 = sbr.rel (%p247) target = $region28
        $region27: #{tpu_custom_call.1} parent=15 // pred_region
          #allocation10 [shape = 'u32[6]{0}', space=smem, size = 0x18, scoped, tag = 'DMA stride descriptor']
          %s250 = sand.u32 %s18, 1
          %s251 = scalar_lea.sflag [#allocation6], %s250
          %s252 = sand.u32 %s123, 1
          %s253 = smul.addr %s252, 256
          %s254 = scalar_lea.vmem [#allocation7], %s253
          %s255 = smul.u32 2, %s25
          %s256 = smul.u32 2, %s27
          %s258 = ssub.s32 4096, 4096
          %259 = vsyncadd %s251, %s258
          %s260 = smul.addr %s26, 16
          %s261 = sadd.s32 %s256, %s260
          %s262 = smul.addr %s255, 48
          %s263 = sadd.s32 %s261, %s262
          %s264 = smul.addr %s263, 128
          %s265 = scalar_lea.hbm %s2, %s264
          %s267 = sshll.u32 1, 14
          %s268 = sxor.u32 4294967295, %s267
          %s270 = sld [smem:[#allocation0]]
          %s271 = sadd.s32 2, %s270
          %s273 = sshll.u32 7, 26
          %s274 = sxor.u32 4294967295, %s273
          %s275 = sand.u32 0, %s274
          %s276 = sshll.u32 %s271, 26
          %s277 = sor.u32 %s275, %s276
          %s278 = sshll.u32 %s254, 4
          %s279 = int_to_ptr.vmem [resolvable:$true] %s278
          %285 = sst [smem:[#allocation10]] 6144
          %s286 = scalar_lea.smem [#allocation10], 1
          %287 = sst [smem:[%s286]] 2048
          %s288 = scalar_lea.smem [#allocation10], 2
          %289 = sst [smem:[%s288]] 8
          %s290 = scalar_lea.smem [#allocation10], 3
          %291 = sst [smem:[%s290]] 256
          %s292 = scalar_lea.smem [#allocation10], 4
          %293 = sst [smem:[%s292]] 256
          %s294 = scalar_lea.smem [#allocation10], 5
          %295 = sst [smem:[%s294]] 16
          %297 = dma.general %s265, 4096, %s279, %s251, [#allocation9], [#allocation10], %s277, 0
        $region28: #{tpu_custom_call.1} parent=15 // pred_fallthru
          _
      $region16: #{tpu_custom_call.1} parent=5 // pred_fallthru
        _
      %p298 = scmp.le.s32.totalorder 1, %s18
      %p299 = scmp.lt.s32.totalorder %s18, 4
      %p300 = pnand %p298, %p299
      %p301 = pneg %p300
      // Predicated region
      $region29: #{tpu_custom_call.1} parent=5 // pred_check
        _
      $region30: #{tpu_custom_call.1} parent=5 // pred_check_branch
        %303 = sbr.rel (%p300) target = $region32
      $region31: #{tpu_custom_call.1} parent=5 // pred_region
        %s304 = ssub.s32 %s18, 1
        %s305 = sand.u32 %s60, 1
        %s306 = scalar_lea.sflag [#allocation3], %s305
        %s307 = sand.u32 %s60, 1
        %s308 = smul.addr %s307, 32
        %s309 = scalar_lea.vmem [#allocation2], %s308
        // Predicated region
        $region33: #{tpu_custom_call.1} parent=31 // pred_check
          %p310 = pneg %p73
        $region34: #{tpu_custom_call.1} parent=31 // pred_check_branch
          %312 = sbr.rel (%p310) target = $region36
        $region35: #{tpu_custom_call.1} parent=31 // pred_region
          %313 = dma.done %s306, 512
        $region36: #{tpu_custom_call.1} parent=31 // pred_fallthru
          _
        %s314 = sand.u32 %s23, 1
        %s315 = scalar_lea.sflag [#allocation6], %s314
        %s316 = sand.u32 %s96, 1
        %s317 = smul.addr %s316, 32
        %s318 = scalar_lea.vmem [#allocation5], %s317
        // Predicated region
        $region37: #{tpu_custom_call.1} parent=31 // pred_check
          %p319 = pneg %p109
        $region38: #{tpu_custom_call.1} parent=31 // pred_check_branch
          %321 = sbr.rel (%p319) target = $region40
        $region39: #{tpu_custom_call.1} parent=31 // pred_region
          %322 = dma.done %s315, 512
        $region40: #{tpu_custom_call.1} parent=31 // pred_fallthru
          _
        %s323 = sand.u32 %s23, 1
        %s324 = scalar_lea.sflag [#allocation6], %s323
        %s325 = sand.u32 %s126, 1
        %s326 = smul.addr %s325, 256
        %s327 = scalar_lea.vmem [#allocation7], %s326
        // Predicated region
        $region41: #{tpu_custom_call.1} parent=31 // pred_check
          %p328 = pneg %p139
        $region42: #{tpu_custom_call.1} parent=31 // pred_check_branch
          %330 = sbr.rel (%p328) target = $region44
        $region43: #{tpu_custom_call.1} parent=31 // pred_region
          %331 = dma.done %s324, 4096
        $region44: #{tpu_custom_call.1} parent=31 // pred_fallthru
          _
        %s332 = sand.u32 %s60, 1
        %s333 = scalar_lea.sflag [#allocation3], %s332
        %s334 = sand.u32 %s60, 1
        %s335 = smul.addr %s334, 32
        %s336 = scalar_lea.vmem [#allocation2], %s335
        %p337 = pneg %p73
        %p338 = pneg %p70
        %s339 = sand.u32 %s23, 1
        %s340 = scalar_lea.sflag [#allocation6], %s339
        %s341 = sand.u32 %s96, 1
        %s342 = smul.addr %s341, 32
        %s343 = scalar_lea.vmem [#allocation5], %s342
        %p344 = pneg %p109
        %p345 = pneg %p106
        %s346 = sand.u32 %s23, 1
        %s347 = scalar_lea.sflag [#allocation6], %s346
        %s348 = sand.u32 %s126, 1
        %s349 = smul.addr %s348, 256
        %s350 = scalar_lea.vmem [#allocation7], %s349
        %p351 = pneg %p139
        %p352 = pneg %p136
        %p353 = pneg %p169
        %p354 = pneg %p166
        %s355 = sand.u32 %s156, 1
        %s356 = scalar_lea.sflag [#allocation4], %s355
        %s357 = sand.u32 %s156, 1
        %s358 = smul.addr %s357, 256
        %s359 = scalar_lea.vmem [#allocation8], %s358
        %s360 = sadd.s32 %s29, 1
        %p361 = scmp.lt.s32.totalorder %s360, 2
        %s362 = scalar_select %p361, %s360, 2
        %s363 = smul.u32 2, %s28
        %s364 = smul.u32 2, %s30
        %s365 = ssub.s32 %s29, 1
        %p366 = scmp.gt.s32.totalorder %s365, 0
        %s367 = scalar_select %p366, %s365, 0
        %s368 = smul.u32 2, %s28
        %s369 = smul.u32 2, %s30
        %s370 = smul.u32 2, %s28
        %s371 = smul.u32 2, %s30
        %s372 = smul.u32 2, %s28
        %s373 = smul.u32 2, %s30
        %v374 = vld [vmem:[%s327 + $0x20] sm:$0xff]
        %v375 = vld [vmem:[%s327 + $0x28] sm:$0xff]
        %v376 = vld [vmem:[%s327 + $0x30] sm:$0xff]
        %v377 = vld [vmem:[%s327 + $0x38] sm:$0xff]
        %v378 = vld [vmem:[%s327 + $0x40] sm:$0xff]
        %v379 = vld [vmem:[%s327 + $0x48] sm:$0xff]
        %v380 = vld [vmem:[%s327 + $0x50] sm:$0xff]
        %v381 = vld [vmem:[%s327 + $0x58] sm:$0xff]
        %v382 = vld [vmem:[%s327 + $0x60] sm:$0xff]
        %v383 = vld [vmem:[%s327 + $0x68] sm:$0xff]
        %v384 = vld [vmem:[%s327 + $0x70] sm:$0xff]
        %v385 = vld [vmem:[%s327 + $0x78] sm:$0xff]
        %v386 = vld [vmem:[%s327 + $0xa0] sm:$0xff]
        %v387 = vld [vmem:[%s327 + $0xa8] sm:$0xff]
        %v388 = vld [vmem:[%s327 + $0xb0] sm:$0xff]
        %v389 = vld [vmem:[%s327 + $0xb8] sm:$0xff]
        %v390 = vld [vmem:[%s327 + $0xc0] sm:$0xff]
        %v391 = vld [vmem:[%s327 + $0xc8] sm:$0xff]
        %v392 = vld [vmem:[%s327 + $0xd0] sm:$0xff]
        %v393 = vld [vmem:[%s327 + $0xd8] sm:$0xff]
        %v394 = vld [vmem:[%s327 + $0xe0] sm:$0xff]
        %v395 = vld [vmem:[%s327 + $0xe8] sm:$0xff]
        %v396 = vld [vmem:[%s327 + $0xf0] sm:$0xff]
        %v397 = vld [vmem:[%s327 + $0xf8] sm:$0xff]
        %398 = vst [vmem:[%s359 + $0x20] sm:$0xff] %v374
        %399 = vst [vmem:[%s359 + $0x28] sm:$0xff] %v375
        %400 = vst [vmem:[%s359 + $0x30] sm:$0xff] %v376
        %401 = vst [vmem:[%s359 + $0x38] sm:$0xff] %v377
        %402 = vst [vmem:[%s359 + $0x40] sm:$0xff] %v378
        %403 = vst [vmem:[%s359 + $0x48] sm:$0xff] %v379
        %404 = vst [vmem:[%s359 + $0x50] sm:$0xff] %v380
        %405 = vst [vmem:[%s359 + $0x58] sm:$0xff] %v381
        %406 = vst [vmem:[%s359 + $0x60] sm:$0xff] %v382
        %407 = vst [vmem:[%s359 + $0x68] sm:$0xff] %v383
        %408 = vst [vmem:[%s359 + $0x70] sm:$0xff] %v384
        %409 = vst [vmem:[%s359 + $0x78] sm:$0xff] %v385
        %410 = vst [vmem:[%s359 + $0xa0] sm:$0xff] %v386
        %411 = vst [vmem:[%s359 + $0xa8] sm:$0xff] %v387
        %412 = vst [vmem:[%s359 + $0xb0] sm:$0xff] %v388
        %413 = vst [vmem:[%s359 + $0xb8] sm:$0xff] %v389
        %414 = vst [vmem:[%s359 + $0xc0] sm:$0xff] %v390
        %415 = vst [vmem:[%s359 + $0xc8] sm:$0xff] %v391
        %416 = vst [vmem:[%s359 + $0xd0] sm:$0xff] %v392
        %417 = vst [vmem:[%s359 + $0xd8] sm:$0xff] %v393
        %418 = vst [vmem:[%s359 + $0xe0] sm:$0xff] %v394
        %419 = vst [vmem:[%s359 + $0xe8] sm:$0xff] %v395
        %420 = vst [vmem:[%s359 + $0xf0] sm:$0xff] %v396
        %421 = vst [vmem:[%s359 + $0xf8] sm:$0xff] %v397
        %p422 = scmp.lt.s32.totalorder %s29, 2
        // Predicated region
        $region45: #{tpu_custom_call.1} parent=31 // pred_check
          %p423 = pneg %p422
        $region46: #{tpu_custom_call.1} parent=31 // pred_check_branch
          %425 = sbr.rel (%p423) target = $region48
        $region47: #{tpu_custom_call.1} parent=31 // pred_region
          %v426 = vld [vmem:[%s309] sm:$0xff]
          %v427 = vld [vmem:[%s309 + $0x8] sm:$0xff]
          %v428 = vld [vmem:[%s309 + $0x10] sm:$0xff]
          %v429 = vld [vmem:[%s309 + $0x18] sm:$0xff]
          %430 = vst [vmem:[%s359] sm:$0xff] %v426
          %431 = vst [vmem:[%s359 + $0x8] sm:$0xff] %v427
          %432 = vst [vmem:[%s359 + $0x80] sm:$0xff] %v428
          %433 = vst [vmem:[%s359 + $0x88] sm:$0xff] %v429
        $region48: #{tpu_custom_call.1} parent=31 // pred_fallthru
          _
        %p434 = scmp.eq.s32.totalorder %s29, 2
        // Predicated region
        $region49: #{tpu_custom_call.1} parent=31 // pred_check
          %p435 = pneg %p434
        $region50: #{tpu_custom_call.1} parent=31 // pred_check_branch
          %437 = sbr.rel (%p435) target = $region52
        $region51: #{tpu_custom_call.1} parent=31 // pred_region
          %438 = vst [vmem:[%s359] sm:$0xff] 0.0
          %439 = vst [vmem:[%s359 + $0x8] sm:$0xff] 0.0
          %440 = vst [vmem:[%s359 + $0x80] sm:$0xff] 0.0
          %441 = vst [vmem:[%s359 + $0x88] sm:$0xff] 0.0
        $region52: #{tpu_custom_call.1} parent=31 // pred_fallthru
          _
        %p442 = scmp.gt.s32.totalorder %s29, 0
        // Predicated region
        $region53: #{tpu_custom_call.1} parent=31 // pred_check
          %p443 = pneg %p442
        $region54: #{tpu_custom_call.1} parent=31 // pred_check_branch
          %445 = sbr.rel (%p443) target = $region56
        $region55: #{tpu_custom_call.1} parent=31 // pred_region
          %v446 = vld [vmem:[%s318] sm:$0xff]
          %v447 = vld [vmem:[%s318 + $0x8] sm:$0xff]
          %v448 = vld [vmem:[%s318 + $0x10] sm:$0xff]
          %v449 = vld [vmem:[%s318 + $0x18] sm:$0xff]
          %450 = vst [vmem:[%s359 + $0x10] sm:$0xff] %v446
          %451 = vst [vmem:[%s359 + $0x18] sm:$0xff] %v447
          %452 = vst [vmem:[%s359 + $0x90] sm:$0xff] %v448
          %453 = vst [vmem:[%s359 + $0x98] sm:$0xff] %v449
        $region56: #{tpu_custom_call.1} parent=31 // pred_fallthru
          _
        %p454 = scmp.eq.s32.totalorder %s29, 0
        // Predicated region
        $region57: #{tpu_custom_call.1} parent=31 // pred_check
          %p455 = pneg %p454
        $region58: #{tpu_custom_call.1} parent=31 // pred_check_branch
          %457 = sbr.rel (%p455) target = $region60
        $region59: #{tpu_custom_call.1} parent=31 // pred_region
          %458 = vst [vmem:[%s359 + $0x10] sm:$0xff] 0.0
          %459 = vst [vmem:[%s359 + $0x18] sm:$0xff] 0.0
          %460 = vst [vmem:[%s359 + $0x90] sm:$0xff] 0.0
          %461 = vst [vmem:[%s359 + $0x98] sm:$0xff] 0.0
        $region60: #{tpu_custom_call.1} parent=31 // pred_fallthru
          _
        %s462 = sand.u32 %s156, 1
        %s463 = scalar_lea.sflag [#allocation4], %s462
        %s464 = sand.u32 %s156, 1
        %s465 = smul.addr %s464, 256
        %s466 = scalar_lea.vmem [#allocation8], %s465
        // Predicated region
        $region61: #{tpu_custom_call.1} parent=31 // pred_check
          %p467 = pneg %p166
        $region62: #{tpu_custom_call.1} parent=31 // pred_check_branch
          %469 = sbr.rel (%p467) target = $region64
        $region63: #{tpu_custom_call.1} parent=31 // pred_region
          #allocation12 [shape = 'u32[6]{0}', space=smem, size = 0x18, scoped, tag = 'DMA stride descriptor']
          %s470 = smul.u32 2, %s28
          %s471 = smul.u32 2, %s30
          %s473 = ssub.s32 4096, 4096
          %474 = vsyncadd %s463, %s473
          %s475 = smul.addr %s29, 16
          %s476 = sadd.s32 %s471, %s475
          %s477 = smul.addr %s470, 48
          %s478 = sadd.s32 %s476, %s477
          %s479 = smul.addr %s478, 128
          %s480 = scalar_lea.hbm %s3, %s479
          %s482 = sshll.u32 1, 14
          %s483 = sxor.u32 4294967295, %s482
          %s486 = sshll.u32 7, 18
          %s487 = sxor.u32 4294967295, %s486
          %s488 = sand.u32 0, %s487
          %s490 = sor.u32 %s488, 0
          %s492 = sshll.u32 3, 24
          %s493 = sxor.u32 4294967295, %s492
          %s494 = sand.u32 %s490, %s493
          %s496 = sor.u32 %s494, 0
          %s497 = sshll.u32 %s466, 4
          %s498 = int_to_ptr.vmem [resolvable:$true] %s497
          %504 = sst [smem:[#allocation12]] 2048
          %s505 = scalar_lea.smem [#allocation12], 1
          %506 = sst [smem:[%s505]] 6144
          %s507 = scalar_lea.smem [#allocation12], 2
          %508 = sst [smem:[%s507]] 8
          %s509 = scalar_lea.smem [#allocation12], 3
          %510 = sst [smem:[%s509]] 256
          %s511 = scalar_lea.smem [#allocation12], 4
          %512 = sst [smem:[%s511]] 256
          %s513 = scalar_lea.smem [#allocation12], 5
          %514 = sst [smem:[%s513]] 16
          %516 = dma.general %s498, 4096, %s480, %s463, [#allocation11], [#allocation12], %s496, 0
        $region64: #{tpu_custom_call.1} parent=31 // pred_fallthru
          _
      $region32: #{tpu_custom_call.1} parent=5 // pred_fallthru
        _
      %p517 = scmp.le.s32.totalorder 2, %s18
      // Predicated region
      $region65: #{tpu_custom_call.1} parent=5 // pred_check
        %p518 = pneg %p517
      $region66: #{tpu_custom_call.1} parent=5 // pred_check_branch
        %520 = sbr.rel (%p518) target = $region68
      $region67: #{tpu_custom_call.1} parent=5 // pred_region
        %s521 = ssub.s32 %s18, 2
        // Predicated region
        $region69: #{tpu_custom_call.1} parent=67 // pred_check
          %p522 = pneg %p172
        $region70: #{tpu_custom_call.1} parent=67 // pred_check_branch
          %524 = sbr.rel (%p522) target = $region72
        $region71: #{tpu_custom_call.1} parent=67 // pred_region
          %s525 = sand.u32 %s157, 1
          %s526 = scalar_lea.sflag [#allocation4], %s525
          %s527 = sand.u32 %s157, 1
          %s528 = smul.addr %s527, 256
          %s529 = scalar_lea.vmem [#allocation8], %s528
          %530 = dma.done %s526, 4096
        $region72: #{tpu_custom_call.1} parent=67 // pred_fallthru
          _
      $region68: #{tpu_custom_call.1} parent=5 // pred_fallthru
        _
    $region6: #{tpu_custom_call.1} parent=1 // loop_footer
      %s22 = sadd.s32 1, %s18
    $region7: #{tpu_custom_call.1} parent=1 // loop_footer_branch
      %17 = sbr.rel target = $region3
    $region8: #{tpu_custom_call.1} parent=1 // loop_exit
      _
    %531 = vsyncpa [#allocation3], 1
    %s532 = scalar_lea.sflag [#allocation3], 1
    %533 = vsyncpa %s532, 1
    %534 = vsyncpa [#allocation6], 1
    %s535 = scalar_lea.sflag [#allocation6], 1
    %536 = vsyncpa %s535, 1
    %537 = vsyncpa [#allocation4], 1
    %s538 = scalar_lea.sflag [#allocation4], 1
    %539 = vsyncpa %s538, 1

</llo_original>
